<compile_context>
chip_gen: v5e
topology: v5e:2x2
jax: 0.10.0
libtpu: 0.0.40
codegen_flags: <defaults>
</compile_context>

<pallas_src>
import jax
import jax.numpy as jnp
from jax.experimental import pallas as pl
from jax.experimental.pallas import tpu as pltpu


def _net3d_kernel(patch_ref, w3_ref, shift_ref, w1_ref, b1_ref, out_ref):
    """One (batch, lane-tile) step of (conv3x3+BN) -> ReLU -> conv1x1.

    patch_ref: (Kp, Nt)        im2col slab tile (lane axis = output pixels)
    w3_ref:    (Cout, Kp)      BN-folded 3x3 weights (zero-padded K cols)
    shift_ref: (Cout, 1)       BN-folded bias (f32)
    w1_ref:    (Cpred_p, Cout) 1x1 prediction weights (zero-padded last row)
    b1_ref:    (Cpred_p, 1)    prediction bias (f32)
    out_ref:   (Cpred_p, Nt)
    """
    # conv3x3 (+ folded BN bias) as a single MXU contraction, K = 9*Cin (padded).
    y = jnp.dot(w3_ref[...], patch_ref[...], preferred_element_type=jnp.float32)
    y = jnp.maximum(y + shift_ref[...], 0.0)
    # 1x1 prediction conv + bias.
    pred = jnp.dot(w1_ref[...], y.astype(w1_ref.dtype),
                   preferred_element_type=jnp.float32) + b1_ref[...]
    out_ref[...] = pred.astype(out_ref.dtype)


def net_3d_forward(x_nchw, params, *, stride=1, joints=21,
                   compute_dtype=jnp.float32):
    """Runs the fused net_3d forward. x_nchw: (B, Cin, H, W) float32.

    compute_dtype: dtype for the patch slab / weights fed to the MXU
      (jnp.float32 or jnp.bfloat16). Accumulation, bias and ReLU stay f32,
      output is f32.
    """
    w3 = params["conv3_w"]          # (Cout, Cin, 3, 3)  -- PyTorch layout
    gamma = params["bn_gamma"]
    beta = params["bn_beta"]
    mean = params["bn_mean"]
    var = params["bn_var"]
    w1 = params["pred_w"]           # (joints*3, Cout, 1, 1)
    b1 = params["pred_b"]           # (joints*3,)
    eps = 1e-5

    B, c_in, H, W = x_nchw.shape
    c_out = w3.shape[0]
    c_pred = w1.shape[0]
    h_out = (H + 2 - 3) // stride + 1
    w_out = (W + 2 - 3) // stride + 1
    n_hw = h_out * w_out

    # ---- plain-JAX glue: im2col (stride handled here), BN folding ----------
    x_pad = jnp.pad(x_nchw, ((0, 0), (0, 0), (1, 1), (1, 1)))
    taps = []
    for dy in range(3):
        for dx in range(3):
            taps.append(jax.lax.slice(
                x_pad,
                (0, 0, dy, dx),
                (B, c_in,
                 dy + (h_out - 1) * stride + 1,
                 dx + (w_out - 1) * stride + 1),
                (1, 1, stride, stride)))                  # (B, Cin, Hout, Wout)
    patches = jnp.concatenate(taps, axis=1)               # (B, 9*Cin, Hout, Wout)
    patches = patches.reshape(B, 9 * c_in, n_hw)          # batch-major, no transpose

    # Sublane-align the contraction dim (9*Cin -> multiple of 8, zero rows)
    # and lane-pad the pixel axis per-batch (multiple of 128, zero lanes).
    kp = ((9 * c_in + 7) // 8) * 8
    hw_pad = pl.cdiv(n_hw, 128) * 128
    patches = jnp.pad(patches,
                      ((0, 0), (0, kp - 9 * c_in), (0, hw_pad - n_hw)))
    patches = patches.astype(compute_dtype)

    # Lane-tile selection: biggest divisor of hw_pad (fewest, largest steps).
    candidates = [t for t in (8192, 4096, 2048, 1024, 512, 256, 128)
                  if hw_pad % t == 0]
    n_tile = candidates[0] if candidates else hw_pad
    if B == 1:
        # v7x: keep >= 2 parallel grid steps when batch can't provide them.
        for t in candidates:
            if hw_pad // t >= 2:
                n_tile = t
                break
    grid_n = hw_pad // n_tile

    # Fold BatchNorm into the 3x3 conv weights / bias (free at trace time).
    bn_scale = gamma * jax.lax.rsqrt(var + eps)            # (Cout,)
    bn_shift = beta - mean * bn_scale                      # (Cout,)
    # (Cout, Cin, ky, kx) -> (Cout, ky, kx, Cin) -> (Cout, 9*Cin); row order of
    # the patch slab is (ky, kx) outer, Cin inner, matching this reshape.
    w3_mat = jnp.transpose(w3, (0, 2, 3, 1)).reshape(c_out, 9 * c_in)
    w3_mat = w3_mat * bn_scale[:, None]
    w3_mat = jnp.pad(w3_mat, ((0, 0), (0, kp - 9 * c_in))).astype(compute_dtype)
    shift_col = bn_shift.reshape(c_out, 1).astype(jnp.float32)

    # Pad the prediction head 63 -> 64 rows (zero weights + zero bias) so the
    # output store is fully unmasked; sliced off below.
    c_pred_p = ((c_pred + 7) // 8) * 8
    w1_mat = w1[:, :, 0, 0]                                # (Cpred, Cout)
    w1_mat = jnp.pad(w1_mat, ((0, c_pred_p - c_pred), (0, 0))).astype(compute_dtype)
    b1_col = jnp.pad(b1, (0, c_pred_p - c_pred)).reshape(c_pred_p, 1)
    b1_col = b1_col.astype(jnp.float32)

    out_padded = pl.pallas_call(
        _net3d_kernel,
        out_shape=jax.ShapeDtypeStruct((B, c_pred_p, hw_pad), jnp.float32),
        grid_spec=pltpu.PrefetchScalarGridSpec(
            num_scalar_prefetch=0,
            grid=(B, grid_n),
            in_specs=[
                pl.BlockSpec((pl.Squeezed(), kp, n_tile),
                             lambda b, n: (b, 0, n)),
                pl.BlockSpec((c_out, kp), lambda b, n: (0, 0)),
                pl.BlockSpec((c_out, 1), lambda b, n: (0, 0)),
                pl.BlockSpec((c_pred_p, c_out), lambda b, n: (0, 0)),
                pl.BlockSpec((c_pred_p, 1), lambda b, n: (0, 0)),
            ],
            out_specs=pl.BlockSpec((pl.Squeezed(), c_pred_p, n_tile),
                                   lambda b, n: (b, 0, n)),
        ),
        compiler_params=pltpu.CompilerParams(
            dimension_semantics=("parallel", "parallel"),
            vmem_limit_bytes=48 * 1024 * 1024),
    )(patches, w3_mat, shift_col, w1_mat, b1_col)

    # Already batch-major: just drop the pads and reshape.
    out = out_padded[:, :c_pred, :n_hw]                    # (B, Cpred, HW)
    dmap = out.reshape(B, joints, 3, h_out, w_out)
    return dmap


def _reference_forward(x_nchw, params, *, stride=1, joints=21):
    """Pure-JAX reference mirroring the PyTorch module (for validation)."""
    w3, gamma, beta, mean, var = (params["conv3_w"], params["bn_gamma"],
                                  params["bn_beta"], params["bn_mean"],
                                  params["bn_var"])
    w1, b1 = params["pred_w"], params["pred_b"]
    eps = 1e-5
    y = jax.lax.conv_general_dilated(
        x_nchw, w3, window_strides=(stride, stride), padding=((1, 1), (1, 1)),
        dimension_numbers=("NCHW", "OIHW", "NCHW"))
    y = (y - mean[None, :, None, None]) / jnp.sqrt(var[None, :, None, None] + eps)
    y = y * gamma[None, :, None, None] + beta[None, :, None, None]
    y = jnp.maximum(y, 0.0)
    y = jax.lax.conv_general_dilated(
        y, w1, window_strides=(1, 1), padding=((0, 0), (0, 0)),
        dimension_numbers=("NCHW", "OIHW", "NCHW"))
    y = y + b1[None, :, None, None]
    B, _, H, W = y.shape
    return y.reshape(B, joints, 3, H, W)


if __name__ == "__main__":
    key = jax.random.PRNGKey(0)
    B, C_IN, H, W = 2, 4, 16, 16
    C_OUT = 8
    JOINTS = 21
    STRIDE = 1

    ks = jax.random.split(key, 8)
    params = {
        "conv3_w": jax.random.normal(ks[0], (C_OUT, C_IN, 3, 3), jnp.float32) * 0.1,
        "bn_gamma": 1.0 + 0.1 * jax.random.normal(ks[1], (C_OUT,), jnp.float32),
        "bn_beta": 0.1 * jax.random.normal(ks[2], (C_OUT,), jnp.float32),
        "bn_mean": 0.05 * jax.random.normal(ks[3], (C_OUT,), jnp.float32),
        "bn_var": jnp.abs(1.0 + 0.1 * jax.random.normal(ks[4], (C_OUT,), jnp.float32)),
        "pred_w": jax.random.normal(ks[5], (JOINTS * 3, C_OUT, 1, 1), jnp.float32) * 0.1,
        "pred_b": 0.1 * jax.random.normal(ks[6], (JOINTS * 3,), jnp.float32),
    }
    x = jax.random.normal(ks[7], (B, C_IN, H, W), jnp.float32)

    ref = jax.block_until_ready(
        _reference_forward(x, params, stride=STRIDE, joints=JOINTS))

    # f32 path (default): tight tolerance vs the reference.
    dmap = net_3d_forward(x, params, stride=STRIDE, joints=JOINTS)
    dmap = jax.block_until_ready(dmap)
    assert dmap.shape == (B, JOINTS, 3, H, W), dmap.shape
    assert jnp.allclose(dmap, ref, rtol=1e-3, atol=1e-3), "f32 mismatch vs reference"

    # bf16 compute path (halves HBM patch traffic on v6e/v7x): looser tolerance.
    dmap_bf16 = net_3d_forward(x, params, stride=STRIDE, joints=JOINTS,
                               compute_dtype=jnp.bfloat16)
    dmap_bf16 = jax.block_until_ready(dmap_bf16)
    assert jnp.allclose(dmap_bf16, ref, rtol=2e-2, atol=2e-2), "bf16 mismatch vs reference"

    print("KERNEL_OK")
</pallas_src>

<mosaic_0001>
module attributes {stable_mosaic.version = 11 : i64} {
  func.func @_net3d_kernel(%arg0: i32, %arg1: i32, %arg2: memref<1x40x256xf32, #tpu.memory_space<vmem>>, %arg3: memref<8x40xf32, #tpu.memory_space<vmem>>, %arg4: memref<8x1xf32, #tpu.memory_space<vmem>>, %arg5: memref<64x8xf32, #tpu.memory_space<vmem>>, %arg6: memref<64x1xf32, #tpu.memory_space<vmem>>, %arg7: memref<1x64x256xf32, #tpu.memory_space<vmem>>) attributes {dimension_semantics = [#tpu.dimension_semantics<parallel>, #tpu.dimension_semantics<parallel>], iteration_bounds = array<i64: 2, 1>, scalar_prefetch = 0 : i64, scratch_operands = 0 : i64, tpu.core_type = #tpu.core_type<tc>, window_params = [{transform_indices = @transform_0, window_bounds = array<i64: 1, 40, 256>}, {pipeline_mode = #tpu.pipeline_mode<synchronous>, transform_indices = @transform_1, window_bounds = array<i64: 8, 40>}, {pipeline_mode = #tpu.pipeline_mode<synchronous>, transform_indices = @transform_2, window_bounds = array<i64: 8, 1>}, {pipeline_mode = #tpu.pipeline_mode<synchronous>, transform_indices = @transform_3, window_bounds = array<i64: 64, 8>}, {pipeline_mode = #tpu.pipeline_mode<synchronous>, transform_indices = @transform_4, window_bounds = array<i64: 64, 1>}, {transform_indices = @transform_5, window_bounds = array<i64: 1, 64, 256>}]} {
    %c0 = arith.constant 0 : index
    %c0_0 = arith.constant 0 : index
    %0 = vector.load %arg3[%c0, %c0_0] : memref<8x40xf32, #tpu.memory_space<vmem>>, vector<8x40xf32>
    %c0_1 = arith.constant 0 : index
    %c0_2 = arith.constant 0 : index
    %c0_3 = arith.constant 0 : index
    %1 = vector.load %arg2[%c0_1, %c0_2, %c0_3] : memref<1x40x256xf32, #tpu.memory_space<vmem>>, vector<1x40x256xf32>
    %2 = vector.shape_cast %1 : vector<1x40x256xf32> to vector<40x256xf32>
    %cst = arith.constant dense<0.000000e+00> : vector<8x256xf32>
    %3 = tpu.matmul %0, %2, %cst {dimension_numbers = #tpu.dot_dimension_numbers<[1], [0], [0], [1], [0, 0, 1, 1], [], []>} : vector<8x40xf32>, vector<40x256xf32>, vector<8x256xf32> -> vector<8x256xf32>
    %c0_4 = arith.constant 0 : index
    %c0_5 = arith.constant 0 : index
    %4 = vector.load %arg4[%c0_4, %c0_5] : memref<8x1xf32, #tpu.memory_space<vmem>>, vector<8x1xf32>
    %5 = vector.broadcast %4 : vector<8x1xf32> to vector<8x256xf32>
    %6 = arith.addf %3, %5 : vector<8x256xf32>
    %cst_6 = arith.constant 0.000000e+00 : f32
    %7 = vector.broadcast %cst_6 : f32 to vector<8x256xf32>
    %8 = arith.maximumf %6, %7 : vector<8x256xf32>
    %c0_7 = arith.constant 0 : index
    %c0_8 = arith.constant 0 : index
    %9 = vector.load %arg5[%c0_7, %c0_8] : memref<64x8xf32, #tpu.memory_space<vmem>>, vector<64x8xf32>
    %cst_9 = arith.constant dense<0.000000e+00> : vector<64x256xf32>
    %10 = tpu.matmul %9, %8, %cst_9 {dimension_numbers = #tpu.dot_dimension_numbers<[1], [0], [0], [1], [0, 0, 1, 1], [], []>} : vector<64x8xf32>, vector<8x256xf32>, vector<64x256xf32> -> vector<64x256xf32>
    %c0_10 = arith.constant 0 : index
    %c0_11 = arith.constant 0 : index
    %11 = vector.load %arg6[%c0_10, %c0_11] : memref<64x1xf32, #tpu.memory_space<vmem>>, vector<64x1xf32>
    %12 = vector.broadcast %11 : vector<64x1xf32> to vector<64x256xf32>
    %13 = arith.addf %10, %12 : vector<64x256xf32>
    %c0_12 = arith.constant 0 : index
    %c0_13 = arith.constant 0 : index
    %c0_14 = arith.constant 0 : index
    %14 = vector.load %arg7[%c0_12, %c0_13, %c0_14] : memref<1x64x256xf32, #tpu.memory_space<vmem>>, vector<1x64x256xf32>
    %15 = vector.shape_cast %14 : vector<1x64x256xf32> to vector<64x256xf32>
    %16 = vector.shape_cast %13 : vector<64x256xf32> to vector<1x64x256xf32>
    tpu.vector_store %arg7[%c0_12, %c0_13, %c0_14], %16 {strides = array<i32>} : memref<1x64x256xf32, #tpu.memory_space<vmem>>, vector<1x64x256xf32>,
    return
  }
  func.func @transform_0(%arg0: i32, %arg1: i32) -> (i32, i32, i32) {
    %c0_i32 = arith.constant 0 : i32
    %c0_i32_0 = arith.constant 0 : i32
    return %arg0, %c0_i32, %arg1 : i32, i32, i32
  }
  func.func @transform_1(%arg0: i32, %arg1: i32) -> (i32, i32) {
    %c0_i32 = arith.constant 0 : i32
    %c0_i32_0 = arith.constant 0 : i32
    %c0_i32_1 = arith.constant 0 : i32
    return %c0_i32, %c0_i32_0 : i32, i32
  }
  func.func @transform_2(%arg0: i32, %arg1: i32) -> (i32, i32) {
    %c0_i32 = arith.constant 0 : i32
    %c0_i32_0 = arith.constant 0 : i32
    %c0_i32_1 = arith.constant 0 : i32
    return %c0_i32, %c0_i32_0 : i32, i32
  }
  func.func @transform_3(%arg0: i32, %arg1: i32) -> (i32, i32) {
    %c0_i32 = arith.constant 0 : i32
    %c0_i32_0 = arith.constant 0 : i32
    %c0_i32_1 = arith.constant 0 : i32
    return %c0_i32, %c0_i32_0 : i32, i32
  }
  func.func @transform_4(%arg0: i32, %arg1: i32) -> (i32, i32) {
    %c0_i32 = arith.constant 0 : i32
    %c0_i32_0 = arith.constant 0 : i32
    %c0_i32_1 = arith.constant 0 : i32
    return %c0_i32, %c0_i32_0 : i32, i32
  }
  func.func @transform_5(%arg0: i32, %arg1: i32) -> (i32, i32, i32) {
    %c0_i32 = arith.constant 0 : i32
    %c0_i32_0 = arith.constant 0 : i32
    return %arg0, %c0_i32, %arg1 : i32, i32, i32
  }
}

</mosaic_0001>

<llo_original>
// kernel: tpu_custom_call.1
$region0: #{tpu_custom_call.1}
  #allocation0 [shape = 'u32[]', space=smem, size = 0x4, offset = 0x4, fixed_abs, tag = 'smem constant byte address 0x4 - core index']
  #allocation1 [shape = 'u32[72,128]{1,0:T(1,128)}', space=vmem, size = 0x9000, scoped, tag = 'internal scratch']
  %s0 = inlined_call_operand.hbm [shape: f32[2,40,256], index: 0, kind: input, shape index: {}]
  %s1 = inlined_call_operand.vmem [shape: f32[8,40], index: 1, kind: input, shape index: {}]
  %s2 = inlined_call_operand.vmem [shape: f32[8,1], index: 2, kind: input, shape index: {}]
  %s3 = inlined_call_operand.vmem [shape: f32[64,8], index: 3, kind: input, shape index: {}]
  %s4 = inlined_call_operand.vmem [shape: f32[64,1], index: 4, kind: input, shape index: {}]
  %s5 = inlined_call_operand.hbm [shape: f32[2,64,256], index: 5, kind: output, shape index: {}]
  %s6 = sld [smem:[#allocation0]]
  $region57: #{tpu_custom_call.1} parent=0
    _
  %s8 = ssub.s32 1, %s6
  %s9 = scalar_select 0, %s8, %s6
  $region1: #{tpu_custom_call.1} parent=0
    #allocation2 [shape = 'u8[81920]{0}', space=vmem, size = 0x14000, scoped, tag = 'input window, operand 0']
    #allocation3 [shape = 's32[2]{0}', space=sflag, size = 0x8, scoped, tag = 'scoped memory for tpu_custom_call.1']
    #allocation4 [shape = 's32[2]{0}', space=sflag, size = 0x8, scoped, tag = 'scoped memory for tpu_custom_call.1']
    #allocation5 [shape = 'u8[131072]{0}', space=vmem, size = 0x20000, scoped, tag = 'output window, operand 0']
    %10 = vsyncpa [#allocation3], 0
    %s11 = scalar_lea.sflag [#allocation3], 1
    %12 = vsyncpa %s11, 0
    %13 = vsyncpa [#allocation4], 0
    %s14 = scalar_lea.sflag [#allocation4], 1
    %15 = vsyncpa %s14, 0
    loop: start=0, step=1, limit=4
    $region2: #{tpu_custom_call.1} parent=1 // loop_pre_header
      _
    $region3: #{tpu_custom_call.1} parent=1 // loop_header
      %s17 = sphi 0, %s21
      %p18 = scmp.ge.s32.totalorder %s17, 4
      %s24 = sphi 0, %s36
      %s25 = sphi 0, %s32
      %s26 = sphi 0, %s24
      %s27 = sphi 0, %s25
      %s28 = sphi 0, %s26
      %s29 = sphi 0, %s27
      %s41 = sphi 0, %s43
      %s44 = sphi 0, %s41
      %s45 = sphi 0, %s44
      %s61 = sphi 0, %s45
      %s65 = sphi 0, %s65
      %s67 = sphi 0, %s65
      %s68 = sphi 0, %s67
      %s82 = sphi 0, %s68
      %s86 = sphi 0, %s86
      %s88 = sphi 0, %s86
      %s89 = sphi 0, %s88
      %s103 = sphi 0, %s89
      %s107 = sphi 0, %s107
      %s109 = sphi 0, %s107
      %s110 = sphi 0, %s109
      %s124 = sphi 0, %s110
      %s128 = sphi 0, %s128
      %s130 = sphi 0, %s128
      %s131 = sphi 0, %s130
      %s145 = sphi 0, %s131
      %s153 = sphi 0, %s155
      %s156 = sphi 0, %s153
      %s157 = sphi 0, %s156
      %s173 = sphi 0, %s157
    $region4: #{tpu_custom_call.1} parent=1 // loop_header_branch
      %20 = sbr.rel (%p18) target = $region8
    $region5: #{tpu_custom_call.1} parent=1 // loop_body
      %s22 = ssub.s32 %s17, 1
      %s23 = ssub.s32 %s17, 2
      %s30 = sadd.s32 1, %s25
      %p31 = scmp.ge.s32.totalorder %s30, 1
      %s32 = scalar_select %p31, 0, %s30
      %s33 = sadd.s32 1, %s24
      %s34 = scalar_select %p31, %s33, %s24
      %p35 = scmp.ge.s32.totalorder %s34, 2
      %s36 = scalar_select %p35, 0, %s34
      %s37 = ssub.s32 %s24, %s36
      %s38 = ssub.s32 %s25, %s32
      %s39 = sor.u32 %s37, %s38
      %p40 = scmp.eq.s32.totalorder %s39, 0
      %s42 = sadd.s32 %s41, 1
      %s43 = scalar_select %p40, %s41, %s42
      %p46 = pneg %p40
      %p47 = scmp.eq.s32.totalorder %s17, 1
      %p48 = por %p46, %p47
      %p49 = scmp.ne.s32.totalorder %s41, %s44
      %p50 = scmp.eq.s32.totalorder %s17, 0
      %p51 = por %p49, %p50
      %p52 = scmp.ne.s32.totalorder %s41, %s44
      %p53 = scmp.eq.s32.totalorder %s22, 1
      %p54 = por %p52, %p53
      %p55 = scmp.ne.s32.totalorder %s44, %s45
      %p56 = scmp.eq.s32.totalorder %s22, 0
      %p57 = por %p55, %p56
      %p58 = scmp.ne.s32.totalorder %s44, %s45
      %p59 = scmp.eq.s32.totalorder %s23, 1
      %p60 = por %p58, %p59
      %p62 = scmp.ne.s32.totalorder %s45, %s61
      %p63 = scmp.eq.s32.totalorder %s23, 0
      %p64 = por %p62, %p63
      %s66 = sadd.s32 %s65, 1
      %p69 = scmp.eq.s32.totalorder %s17, 1
      %p70 = scmp.ne.s32.totalorder %s65, %s67
      %p71 = scmp.eq.s32.totalorder %s17, 0
      %p72 = por %p70, %p71
      %p73 = scmp.ne.s32.totalorder %s65, %s67
      %p74 = scmp.eq.s32.totalorder %s22, 1
      %p75 = por %p73, %p74
      %p76 = scmp.ne.s32.totalorder %s67, %s68
      %p77 = scmp.eq.s32.totalorder %s22, 0
      %p78 = por %p76, %p77
      %p79 = scmp.ne.s32.totalorder %s67, %s68
      %p80 = scmp.eq.s32.totalorder %s23, 1
      %p81 = por %p79, %p80
      %p83 = scmp.ne.s32.totalorder %s68, %s82
      %p84 = scmp.eq.s32.totalorder %s23, 0
      %p85 = por %p83, %p84
      %s87 = sadd.s32 %s86, 1
      %p90 = scmp.eq.s32.totalorder %s17, 1
      %p91 = scmp.ne.s32.totalorder %s86, %s88
      %p92 = scmp.eq.s32.totalorder %s17, 0
      %p93 = por %p91, %p92
      %p94 = scmp.ne.s32.totalorder %s86, %s88
      %p95 = scmp.eq.s32.totalorder %s22, 1
      %p96 = por %p94, %p95
      %p97 = scmp.ne.s32.totalorder %s88, %s89
      %p98 = scmp.eq.s32.totalorder %s22, 0
      %p99 = por %p97, %p98
      %p100 = scmp.ne.s32.totalorder %s88, %s89
      %p101 = scmp.eq.s32.totalorder %s23, 1
      %p102 = por %p100, %p101
      %p104 = scmp.ne.s32.totalorder %s89, %s103
      %p105 = scmp.eq.s32.totalorder %s23, 0
      %p106 = por %p104, %p105
      %s108 = sadd.s32 %s107, 1
      %p111 = scmp.eq.s32.totalorder %s17, 1
      %p112 = scmp.ne.s32.totalorder %s107, %s109
      %p113 = scmp.eq.s32.totalorder %s17, 0
      %p114 = por %p112, %p113
      %p115 = scmp.ne.s32.totalorder %s107, %s109
      %p116 = scmp.eq.s32.totalorder %s22, 1
      %p117 = por %p115, %p116
      %p118 = scmp.ne.s32.totalorder %s109, %s110
      %p119 = scmp.eq.s32.totalorder %s22, 0
      %p120 = por %p118, %p119
      %p121 = scmp.ne.s32.totalorder %s109, %s110
      %p122 = scmp.eq.s32.totalorder %s23, 1
      %p123 = por %p121, %p122
      %p125 = scmp.ne.s32.totalorder %s110, %s124
      %p126 = scmp.eq.s32.totalorder %s23, 0
      %p127 = por %p125, %p126
      %s129 = sadd.s32 %s128, 1
      %p132 = scmp.eq.s32.totalorder %s17, 1
      %p133 = scmp.ne.s32.totalorder %s128, %s130
      %p134 = scmp.eq.s32.totalorder %s17, 0
      %p135 = por %p133, %p134
      %p136 = scmp.ne.s32.totalorder %s128, %s130
      %p137 = scmp.eq.s32.totalorder %s22, 1
      %p138 = por %p136, %p137
      %p139 = scmp.ne.s32.totalorder %s130, %s131
      %p140 = scmp.eq.s32.totalorder %s22, 0
      %p141 = por %p139, %p140
      %p142 = scmp.ne.s32.totalorder %s130, %s131
      %p143 = scmp.eq.s32.totalorder %s23, 1
      %p144 = por %p142, %p143
      %p146 = scmp.ne.s32.totalorder %s131, %s145
      %p147 = scmp.eq.s32.totalorder %s23, 0
      %p148 = por %p146, %p147
      %s149 = ssub.s32 %s24, %s36
      %s150 = ssub.s32 %s25, %s32
      %s151 = sor.u32 %s149, %s150
      %p152 = scmp.eq.s32.totalorder %s151, 0
      %s154 = sadd.s32 %s153, 1
      %s155 = scalar_select %p152, %s153, %s154
      %p158 = pneg %p152
      %p159 = scmp.eq.s32.totalorder %s17, 1
      %p160 = por %p158, %p159
      %p161 = scmp.ne.s32.totalorder %s153, %s156
      %p162 = scmp.eq.s32.totalorder %s17, 0
      %p163 = por %p161, %p162
      %p164 = scmp.ne.s32.totalorder %s153, %s156
      %p165 = scmp.eq.s32.totalorder %s22, 1
      %p166 = por %p164, %p165
      %p167 = scmp.ne.s32.totalorder %s156, %s157
      %p168 = scmp.eq.s32.totalorder %s22, 0
      %p169 = por %p167, %p168
      %p170 = scmp.ne.s32.totalorder %s156, %s157
      %p171 = scmp.eq.s32.totalorder %s23, 1
      %p172 = por %p170, %p171
      %p174 = scmp.ne.s32.totalorder %s157, %s173
      %p175 = scmp.eq.s32.totalorder %s23, 0
      %p176 = por %p174, %p175
      %p177 = scmp.le.s32.totalorder 1, %s17
      %p178 = scmp.lt.s32.totalorder %s17, 3
      %p179 = pnand %p177, %p178
      %p180 = pneg %p179
      // Predicated region
      $region9: #{tpu_custom_call.1} parent=5 // pred_check
        _
      $region10: #{tpu_custom_call.1} parent=5 // pred_check_branch
        %182 = sbr.rel (%p179) target = $region12
      $region11: #{tpu_custom_call.1} parent=5 // pred_region
        %s183 = ssub.s32 %s17, 1
        // Predicated region
        $region13: #{tpu_custom_call.1} parent=11 // pred_check
          %p184 = pneg %p78
        $region14: #{tpu_custom_call.1} parent=11 // pred_check_branch
          %186 = sbr.rel (%p184) target = $region16
        $region15: #{tpu_custom_call.1} parent=11 // pred_region
          _
        $region16: #{tpu_custom_call.1} parent=11 // pred_fallthru
          _
        // Predicated region
        $region17: #{tpu_custom_call.1} parent=11 // pred_check
          %p187 = pneg %p99
        $region18: #{tpu_custom_call.1} parent=11 // pred_check_branch
          %189 = sbr.rel (%p187) target = $region20
        $region19: #{tpu_custom_call.1} parent=11 // pred_region
          _
        $region20: #{tpu_custom_call.1} parent=11 // pred_fallthru
          _
        // Predicated region
        $region21: #{tpu_custom_call.1} parent=11 // pred_check
          %p190 = pneg %p120
        $region22: #{tpu_custom_call.1} parent=11 // pred_check_branch
          %192 = sbr.rel (%p190) target = $region24
        $region23: #{tpu_custom_call.1} parent=11 // pred_region
          _
        $region24: #{tpu_custom_call.1} parent=11 // pred_fallthru
          _
        // Predicated region
        $region25: #{tpu_custom_call.1} parent=11 // pred_check
          %p193 = pneg %p141
        $region26: #{tpu_custom_call.1} parent=11 // pred_check_branch
          %195 = sbr.rel (%p193) target = $region28
        $region27: #{tpu_custom_call.1} parent=11 // pred_region
          _
        $region28: #{tpu_custom_call.1} parent=11 // pred_fallthru
          _
      $region12: #{tpu_custom_call.1} parent=5 // pred_fallthru
        _
      %p196 = scmp.lt.s32.totalorder %s17, 2
      // Predicated region
      $region29: #{tpu_custom_call.1} parent=5 // pred_check
        %p197 = pneg %p196
      $region30: #{tpu_custom_call.1} parent=5 // pred_check_branch
        %199 = sbr.rel (%p197) target = $region32
      $region31: #{tpu_custom_call.1} parent=5 // pred_region
        // Predicated region
        $region33: #{tpu_custom_call.1} parent=31 // pred_check
          %p200 = pneg %p51
        $region34: #{tpu_custom_call.1} parent=31 // pred_check_branch
          %202 = sbr.rel (%p200) target = $region36
        $region35: #{tpu_custom_call.1} parent=31 // pred_region
          %s203 = sand.u32 %s41, 1
          %s204 = scalar_lea.sflag [#allocation3], %s203
          %s205 = sand.u32 %s41, 1
          %s206 = smul.addr %s205, 80
          %s207 = scalar_lea.vmem [#allocation2], %s206
          %s208 = smul.u32 2, %s25
          %210 = vsyncadd %s204, 0
          %s211 = smul.addr %s24, 10
          %s212 = sadd.s32 %s208, %s211
          %s213 = smul.addr %s212, 8
          %s214 = scalar_lea.hbm %s0, %s213
          %s215 = sshll.u32 %s214, 4
          %s216 = int_to_ptr.hbm [resolvable:$true] %s215
          %s217 = sshll.u32 %s207, 4
          %s218 = int_to_ptr.vmem [resolvable:$true] %s217
          %223 = dma.hbm_to_vmem [thread:$0]  %s216, 1280, %s218, %s204, 256, 256, 16
        $region36: #{tpu_custom_call.1} parent=31 // pred_fallthru
          _
      $region32: #{tpu_custom_call.1} parent=5 // pred_fallthru
        _
      %p224 = scmp.le.s32.totalorder 1, %s17
      %p225 = scmp.lt.s32.totalorder %s17, 3
      %p226 = pnand %p224, %p225
      %p227 = pneg %p226
      // Predicated region
      $region37: #{tpu_custom_call.1} parent=5 // pred_check
        _
      $region38: #{tpu_custom_call.1} parent=5 // pred_check_branch
        %229 = sbr.rel (%p226) target = $region40
      $region39: #{tpu_custom_call.1} parent=5 // pred_region
        %s230 = ssub.s32 %s17, 1
        %s231 = sand.u32 %s44, 1
        %s232 = scalar_lea.sflag [#allocation3], %s231
        %s233 = sand.u32 %s44, 1
        %s234 = smul.addr %s233, 80
        %s235 = scalar_lea.vmem [#allocation2], %s234
        // Predicated region
        $region41: #{tpu_custom_call.1} parent=39 // pred_check
          %p236 = pneg %p57
        $region42: #{tpu_custom_call.1} parent=39 // pred_check_branch
          %238 = sbr.rel (%p236) target = $region44
        $region43: #{tpu_custom_call.1} parent=39 // pred_region
          %240 = dma.done %s232, 1280
        $region44: #{tpu_custom_call.1} parent=39 // pred_fallthru
          _
        %s241 = sand.u32 %s44, 1
        %s242 = scalar_lea.sflag [#allocation3], %s241
        %s243 = sand.u32 %s44, 1
        %s244 = smul.addr %s243, 80
        %s245 = scalar_lea.vmem [#allocation2], %s244
        %p246 = pneg %p57
        %p247 = pneg %p54
        %p248 = pneg %p78
        %p249 = pneg %p75
        %p250 = pneg %p99
        %p251 = pneg %p96
        %p252 = pneg %p120
        %p253 = pneg %p117
        %p254 = pneg %p141
        %p255 = pneg %p138
        %p256 = pneg %p169
        %p257 = pneg %p166
        %s258 = sand.u32 %s156, 1
        %s259 = scalar_lea.sflag [#allocation4], %s258
        %s260 = sand.u32 %s156, 1
        %s261 = smul.addr %s260, 128
        %s262 = scalar_lea.vmem [#allocation5], %s261
        %s263 = smul.u32 2, %s27
        %s264 = smul.u32 2, %s27
        %v265 = vld [vmem:[%s1] sm:$0xff]
        %v266 = vld [vmem:[%s235] sm:$0xff]
        %v267 = vld [vmem:[%s235 + $0x8] sm:$0xff]
        %v268 = vld [vmem:[%s235 + $0x10] sm:$0xff]
        %v269 = vld [vmem:[%s235 + $0x18] sm:$0xff]
        %v270 = vld [vmem:[%s235 + $0x20] sm:$0xff]
        %v271 = vld [vmem:[%s235 + $0x28] sm:$0xff]
        %v272 = vld [vmem:[%s235 + $0x30] sm:$0xff]
        %v273 = vld [vmem:[%s235 + $0x38] sm:$0xff]
        %v274 = vld [vmem:[%s235 + $0x40] sm:$0xff]
        %v275 = vld [vmem:[%s235 + $0x48] sm:$0xff]
        %v276 = vld [vmem:[%s2] sm:$0xff]
        %278 = vset.pattern.permute.xlu0 0
        %279 = vperm.xlu0 %278, %v276
        %v280 = vpop.permute.xlu0 %279
        %vm282 = vcmask 326656
        %v284 = vsel %vm282, %v265, 0
        %286 = vmatpush.msra.mxu0 0.0
        %287 = vmatpush.msra.mxu0 0.0
        %288 = vmatpush.msra.mxu0 0.0
        %289 = vmatpush.msra.mxu0 0.0
        %290 = vmatpush.msra.mxu0 0.0
        %291 = vmatpush.msra.mxu0 0.0
        %292 = vmatpush.msra.mxu0 0.0
        %293 = vmatpush.msra.mxu0 0.0
        %294 = vmatpush.msra.mxu0 0.0
        %295 = vmatpush.msra.mxu0 0.0
        %296 = vmatpush.msra.mxu0 0.0
        %297 = vmatpush.msra.mxu0 %v274
        %298 = vmatpush.msra.mxu0 %v272
        %299 = vmatpush.msra.mxu0 %v270
        %300 = vmatpush.msra.mxu0 %v268
        %301 = vmatpush.msra.mxu0 %v266
        %302 = vmatmul.f32.gmra.mxu0 %v284
        %v303 = vpop.f32.mrf.mxu0
        %v304 = vadd.f32 %v280, %v303
        %305 = vdwg.mxu0
        %306 = vmatpush.msra.mxu0 0.0
        %307 = vmatpush.msra.mxu0 0.0
        %308 = vmatpush.msra.mxu0 0.0
        %309 = vmatpush.msra.mxu0 0.0
        %310 = vmatpush.msra.mxu0 0.0
        %311 = vmatpush.msra.mxu0 0.0
        %312 = vmatpush.msra.mxu0 0.0
        %313 = vmatpush.msra.mxu0 0.0
        %314 = vmatpush.msra.mxu0 0.0
        %315 = vmatpush.msra.mxu0 0.0
        %316 = vmatpush.msra.mxu0 0.0
        %317 = vmatpush.msra.mxu0 %v275
        %318 = vmatpush.msra.mxu0 %v273
        %319 = vmatpush.msra.mxu0 %v271
        %320 = vmatpush.msra.mxu0 %v269
        %321 = vmatpush.msra.mxu0 %v267
        %322 = vmatmul.f32.gmra.mxu0 %v284
        %v323 = vpop.f32.mrf.mxu0
        %v324 = vadd.f32 %v280, %v323
        %325 = vdwg.mxu0
        %v326 = vmax.f32 %v304, 0.0
        %v327 = vmax.f32 %v324, 0.0
        %v328 = vld [vmem:[%s3] sm:$0xff]
        %v329 = vld [vmem:[%s3 + $0x8] sm:$0xff]
        %v330 = vld [vmem:[%s3 + $0x10] sm:$0xff]
        %v331 = vld [vmem:[%s3 + $0x18] sm:$0xff]
        %v332 = vld [vmem:[%s3 + $0x20] sm:$0xff]
        %v333 = vld [vmem:[%s3 + $0x28] sm:$0xff]
        %v334 = vld [vmem:[%s3 + $0x30] sm:$0xff]
        %v335 = vld [vmem:[%s3 + $0x38] sm:$0xff]
        %v336 = vld [vmem:[%s4] sm:$0xff]
        %v337 = vld [vmem:[%s4 + $0x8] sm:$0xff]
        %v338 = vld [vmem:[%s4 + $0x10] sm:$0xff]
        %v339 = vld [vmem:[%s4 + $0x18] sm:$0xff]
        %v340 = vld [vmem:[%s4 + $0x20] sm:$0xff]
        %v341 = vld [vmem:[%s4 + $0x28] sm:$0xff]
        %v342 = vld [vmem:[%s4 + $0x30] sm:$0xff]
        %v343 = vld [vmem:[%s4 + $0x38] sm:$0xff]
        %345 = vset.pattern.permute.xlu0 0
        %346 = vperm.xlu0 %345, %v336
        %v347 = vpop.permute.xlu0 %346
        %350 = vset.pattern.permute.xlu0 0
        %351 = vperm.xlu0 %350, %v337
        %v352 = vpop.permute.xlu0 %351
        %355 = vset.pattern.permute.xlu0 0
        %356 = vperm.xlu0 %355, %v338
        %v357 = vpop.permute.xlu0 %356
        %360 = vset.pattern.permute.xlu0 0
        %361 = vperm.xlu0 %360, %v339
        %v362 = vpop.permute.xlu0 %361
        %365 = vset.pattern.permute.xlu0 0
        %366 = vperm.xlu0 %365, %v340
        %v367 = vpop.permute.xlu0 %366
        %370 = vset.pattern.permute.xlu0 0
        %371 = vperm.xlu0 %370, %v341
        %v372 = vpop.permute.xlu0 %371
        %375 = vset.pattern.permute.xlu0 0
        %376 = vperm.xlu0 %375, %v342
        %v377 = vpop.permute.xlu0 %376
        %380 = vset.pattern.permute.xlu0 0
        %381 = vperm.xlu0 %380, %v343
        %v382 = vpop.permute.xlu0 %381
        %vm384 = vcmask 64512
        %v386 = vsel %vm384, %v328, 0
        %v389 = vsel %vm384, %v329, 0
        %v392 = vsel %vm384, %v330, 0
        %v395 = vsel %vm384, %v331, 0
        %v398 = vsel %vm384, %v332, 0
        %v401 = vsel %vm384, %v333, 0
        %v404 = vsel %vm384, %v334, 0
        %v407 = vsel %vm384, %v335, 0
        %409 = vmatpush.msra.mxu0 0.0
        %410 = vmatpush.msra.mxu0 0.0
        %411 = vmatpush.msra.mxu0 0.0
        %412 = vmatpush.msra.mxu0 0.0
        %413 = vmatpush.msra.mxu0 0.0
        %414 = vmatpush.msra.mxu0 0.0
        %415 = vmatpush.msra.mxu0 0.0
        %416 = vmatpush.msra.mxu0 0.0
        %417 = vmatpush.msra.mxu0 0.0
        %418 = vmatpush.msra.mxu0 0.0
        %419 = vmatpush.msra.mxu0 0.0
        %420 = vmatpush.msra.mxu0 0.0
        %421 = vmatpush.msra.mxu0 0.0
        %422 = vmatpush.msra.mxu0 0.0
        %423 = vmatpush.msra.mxu0 0.0
        %424 = vmatpush.msra.mxu0 %v326
        %425 = vmatmul.f32.gmra.mxu0 %v386
        %v426 = vpop.f32.mrf.mxu0
        %v427 = vadd.f32 %v347, %v426
        %428 = vmatmul.f32.gmra.mxu0 %v389
        %v429 = vpop.f32.mrf.mxu0
        %v430 = vadd.f32 %v352, %v429
        %431 = vmatmul.f32.gmra.mxu0 %v392
        %v432 = vpop.f32.mrf.mxu0
        %v433 = vadd.f32 %v357, %v432
        %434 = vmatmul.f32.gmra.mxu0 %v395
        %v435 = vpop.f32.mrf.mxu0
        %v436 = vadd.f32 %v362, %v435
        %437 = vmatmul.f32.gmra.mxu0 %v398
        %v438 = vpop.f32.mrf.mxu0
        %v439 = vadd.f32 %v367, %v438
        %440 = vmatmul.f32.gmra.mxu0 %v401
        %v441 = vpop.f32.mrf.mxu0
        %v442 = vadd.f32 %v372, %v441
        %443 = vmatmul.f32.gmra.mxu0 %v404
        %v444 = vpop.f32.mrf.mxu0
        %v445 = vadd.f32 %v377, %v444
        %446 = vmatmul.f32.gmra.mxu0 %v407
        %v447 = vpop.f32.mrf.mxu0
        %v448 = vadd.f32 %v382, %v447
        %449 = vdwg.mxu0
        %450 = vmatpush.msra.mxu0 0.0
        %451 = vmatpush.msra.mxu0 0.0
        %452 = vmatpush.msra.mxu0 0.0
        %453 = vmatpush.msra.mxu0 0.0
        %454 = vmatpush.msra.mxu0 0.0
        %455 = vmatpush.msra.mxu0 0.0
        %456 = vmatpush.msra.mxu0 0.0
        %457 = vmatpush.msra.mxu0 0.0
        %458 = vmatpush.msra.mxu0 0.0
        %459 = vmatpush.msra.mxu0 0.0
        %460 = vmatpush.msra.mxu0 0.0
        %461 = vmatpush.msra.mxu0 0.0
        %462 = vmatpush.msra.mxu0 0.0
        %463 = vmatpush.msra.mxu0 0.0
        %464 = vmatpush.msra.mxu0 0.0
        %465 = vmatpush.msra.mxu0 %v327
        %466 = vmatmul.f32.gmra.mxu0 %v386
        %v467 = vpop.f32.mrf.mxu0
        %v468 = vadd.f32 %v347, %v467
        %469 = vmatmul.f32.gmra.mxu0 %v389
        %v470 = vpop.f32.mrf.mxu0
        %v471 = vadd.f32 %v352, %v470
        %472 = vmatmul.f32.gmra.mxu0 %v392
        %v473 = vpop.f32.mrf.mxu0
        %v474 = vadd.f32 %v357, %v473
        %475 = vmatmul.f32.gmra.mxu0 %v395
        %v476 = vpop.f32.mrf.mxu0
        %v477 = vadd.f32 %v362, %v476
        %478 = vmatmul.f32.gmra.mxu0 %v398
        %v479 = vpop.f32.mrf.mxu0
        %v480 = vadd.f32 %v367, %v479
        %481 = vmatmul.f32.gmra.mxu0 %v401
        %v482 = vpop.f32.mrf.mxu0
        %v483 = vadd.f32 %v372, %v482
        %484 = vmatmul.f32.gmra.mxu0 %v404
        %v485 = vpop.f32.mrf.mxu0
        %v486 = vadd.f32 %v377, %v485
        %487 = vmatmul.f32.gmra.mxu0 %v407
        %v488 = vpop.f32.mrf.mxu0
        %v489 = vadd.f32 %v382, %v488
        %490 = vdwg.mxu0
        %491 = vst [vmem:[%s262] sm:$0xff] %v427
        %492 = vst [vmem:[%s262 + $0x8] sm:$0xff] %v468
        %493 = vst [vmem:[%s262 + $0x10] sm:$0xff] %v430
        %494 = vst [vmem:[%s262 + $0x18] sm:$0xff] %v471
        %495 = vst [vmem:[%s262 + $0x20] sm:$0xff] %v433
        %496 = vst [vmem:[%s262 + $0x28] sm:$0xff] %v474
        %497 = vst [vmem:[%s262 + $0x30] sm:$0xff] %v436
        %498 = vst [vmem:[%s262 + $0x38] sm:$0xff] %v477
        %499 = vst [vmem:[%s262 + $0x40] sm:$0xff] %v439
        %500 = vst [vmem:[%s262 + $0x48] sm:$0xff] %v480
        %501 = vst [vmem:[%s262 + $0x50] sm:$0xff] %v442
        %502 = vst [vmem:[%s262 + $0x58] sm:$0xff] %v483
        %503 = vst [vmem:[%s262 + $0x60] sm:$0xff] %v445
        %504 = vst [vmem:[%s262 + $0x68] sm:$0xff] %v486
        %505 = vst [vmem:[%s262 + $0x70] sm:$0xff] %v448
        %506 = vst [vmem:[%s262 + $0x78] sm:$0xff] %v489
        %s507 = sand.u32 %s156, 1
        %s508 = scalar_lea.sflag [#allocation4], %s507
        %s509 = sand.u32 %s156, 1
        %s510 = smul.addr %s509, 128
        %s511 = scalar_lea.vmem [#allocation5], %s510
        // Predicated region
        $region45: #{tpu_custom_call.1} parent=39 // pred_check
          %p512 = pneg %p166
        $region46: #{tpu_custom_call.1} parent=39 // pred_check_branch
          %514 = sbr.rel (%p512) target = $region48
        $region47: #{tpu_custom_call.1} parent=39 // pred_region
          %s515 = smul.u32 2, %s27
          %517 = vsyncadd %s508, 0
          %s518 = smul.addr %s26, 16
          %s519 = sadd.s32 %s515, %s518
          %s520 = smul.addr %s519, 8
          %s521 = scalar_lea.hbm %s5, %s520
          %s522 = sshll.u32 %s511, 4
          %s523 = int_to_ptr.vmem [resolvable:$true] %s522
          %s524 = sshll.u32 %s521, 4
          %s525 = int_to_ptr.hbm [resolvable:$true] %s524
          %530 = dma.vmem_to_hbm [thread:$0]  %s523, 2048, %s525, %s508, 256, 256, 16
        $region48: #{tpu_custom_call.1} parent=39 // pred_fallthru
          _
      $region40: #{tpu_custom_call.1} parent=5 // pred_fallthru
        _
      %p531 = scmp.le.s32.totalorder 2, %s17
      // Predicated region
      $region49: #{tpu_custom_call.1} parent=5 // pred_check
        %p532 = pneg %p531
      $region50: #{tpu_custom_call.1} parent=5 // pred_check_branch
        %534 = sbr.rel (%p532) target = $region52
      $region51: #{tpu_custom_call.1} parent=5 // pred_region
        %s535 = ssub.s32 %s17, 2
        // Predicated region
        $region53: #{tpu_custom_call.1} parent=51 // pred_check
          %p536 = pneg %p172
        $region54: #{tpu_custom_call.1} parent=51 // pred_check_branch
          %538 = sbr.rel (%p536) target = $region56
        $region55: #{tpu_custom_call.1} parent=51 // pred_region
          %s539 = sand.u32 %s157, 1
          %s540 = scalar_lea.sflag [#allocation4], %s539
          %s541 = sand.u32 %s157, 1
          %s542 = smul.addr %s541, 128
          %s543 = scalar_lea.vmem [#allocation5], %s542
          %545 = dma.done %s540, 2048
        $region56: #{tpu_custom_call.1} parent=51 // pred_fallthru
          _
      $region52: #{tpu_custom_call.1} parent=5 // pred_fallthru
        _
    $region6: #{tpu_custom_call.1} parent=1 // loop_footer
      %s21 = sadd.s32 1, %s17
    $region7: #{tpu_custom_call.1} parent=1 // loop_footer_branch
      %16 = sbr.rel target = $region3
    $region8: #{tpu_custom_call.1} parent=1 // loop_exit
      _
    %546 = vsyncpa [#allocation3], 1
    %s547 = scalar_lea.sflag [#allocation3], 1
    %548 = vsyncpa %s547, 1
    %549 = vsyncpa [#allocation4], 1
    %s550 = scalar_lea.sflag [#allocation4], 1
    %551 = vsyncpa %s550, 1

</llo_original>
